<compile_context>
chip_gen: v7x
topology: tpu7x:2x2x1
jax: 0.10.0
libtpu: 0.0.40
codegen_flags: <defaults>
</compile_context>

<pallas_src>
import math
import functools

import numpy as np
import jax
import jax.numpy as jnp
from jax.experimental import pallas as pl
from jax.experimental.pallas import tpu as pltpu

LN_EPS = 1e-5
INV_SQRT2 = 1.0 / math.sqrt(2.0)


def _chip_defaults():
    """(tm, tv, vmem_limit_bytes) per TPU generation (bf16 compute assumed)."""
    kind = ""
    try:
        kind = jax.devices()[0].device_kind.lower()
    except Exception:
        pass
    if "v5 lite" in kind or "v5e" in kind or "v5lite" in kind:
        return 256, 2048, 64 * 1024 * 1024
    if "v7" in kind:
        # 64 MiB physical VMEM per TC -> leave headroom in the scoped budget.
        return 512, 2048, 48 * 1024 * 1024
    if "v6" in kind or "trillium" in kind:
        return 512, 2048, 64 * 1024 * 1024
    # Unknown generation: conservative but MXU-friendly.
    return 256, 1024, 64 * 1024 * 1024


def _row_tile(M, tm):
    # (8,128) rule: sublane tile multiple of 8, or the full extent.
    return M if M <= tm else max(8, (tm // 8) * 8)


def _lane_tile(V, tv):
    # (8,128) rule: lane tile multiple of 128, or the full extent.
    if V <= tv:
        return V
    t = max(128, (tv // 128) * 128)
    # Prefer a tile that divides V exactly (avoids the ragged, masked last
    # vocab store), but never shrink below half the requested tile.
    cand = t
    while cand >= max(128, t // 2):
        if V % cand == 0:
            return cand
        cand -= 128
    return t


def _transform_math(x, w1, b1, gamma, beta):
    """dense -> exact GELU -> LayerNorm; accumulation and stats in f32."""
    h = jnp.dot(x, w1, preferred_element_type=jnp.float32) + b1
    h = 0.5 * h * (1.0 + jax.lax.erf(h * INV_SQRT2))          # erf GELU
    mu = jnp.mean(h, axis=-1, keepdims=True)
    var = jnp.mean((h - mu) * (h - mu), axis=-1, keepdims=True)  # biased var
    h = (h - mu) * jax.lax.rsqrt(var + LN_EPS)
    return h * gamma + beta


# --------------------------------------------------------------- fused path
def _fused_kernel(x_ref, w1_ref, b1_ref, g_ref, beta_ref,
                  wdec_ref, bdec_ref, o_ref, h_scratch):
    # grid = (row tiles [parallel], vocab tiles [arbitrary, innermost]).
    # The transform depends only on the row tile: compute it once at j == 0
    # and keep it resident in VMEM scratch for all vocab tiles of this row.
    # NOTE: correctness of this reuse relies on the vocab axis being the
    # innermost, in-order, non-parallel grid axis (dimension_semantics below).
    @pl.when(pl.program_id(1) == 0)
    def _():
        h = _transform_math(x_ref[...], w1_ref[...], b1_ref[...],
                            g_ref[...], beta_ref[...])
        h_scratch[...] = h.astype(h_scratch.dtype)

    o_ref[...] = (jnp.dot(h_scratch[...], wdec_ref[...],
                          preferred_element_type=jnp.float32)
                  + bdec_ref[...]).astype(o_ref.dtype)


# ------------------------------------------------------------ two-pass path
def _transform_kernel(x_ref, w1_ref, b1_ref, g_ref, beta_ref, h_ref):
    h = _transform_math(x_ref[...], w1_ref[...], b1_ref[...],
                        g_ref[...], beta_ref[...])
    h_ref[...] = h.astype(h_ref.dtype)


def _decoder_kernel(h_ref, wdec_ref, bdec_ref, o_ref):
    o_ref[...] = (jnp.dot(h_ref[...], wdec_ref[...],
                          preferred_element_type=jnp.float32)
                  + bdec_ref[...]).astype(o_ref.dtype)


@functools.partial(
    jax.jit,
    static_argnames=("tm", "tv", "vmem_limit_bytes", "compute_dtype",
                     "out_dtype", "two_pass"))
def _mlm_head_2d(x2d, w1_t, b1, gamma, beta, wdec_t, bdec, *,
                 tm, tv, vmem_limit_bytes, compute_dtype, out_dtype, two_pass):
    M, H = x2d.shape
    V = wdec_t.shape[1]

    # bf16 (default) matmul operands; f32 biases / LN params / accumulation.
    xc = x2d.astype(compute_dtype)
    w1c = w1_t.astype(compute_dtype)
    wdc = wdec_t.astype(compute_dtype)
    b1f = b1.astype(jnp.float32)
    gf = gamma.astype(jnp.float32)
    bef = beta.astype(jnp.float32)
    bdf = bdec.astype(jnp.float32)

    tm_eff = _row_tile(M, tm)
    tv_eff = _lane_tile(V, tv)
    n_m = pl.cdiv(M, tm_eff)
    n_v = pl.cdiv(V, tv_eff)
    csz = np.dtype(compute_dtype).itemsize
    osz = np.dtype(out_dtype).itemsize

    cparams = pltpu.CompilerParams(
        dimension_semantics=("parallel", "arbitrary"),
        vmem_limit_bytes=vmem_limit_bytes)

    if not two_pass:
        cost = pl.CostEstimate(
            flops=2 * M * H * H + 2 * M * H * V,
            transcendentals=M * H,
            bytes_accessed=(M * H * csz + H * H * csz
                            + n_m * H * V * csz + M * V * osz))
        return pl.pallas_call(
            _fused_kernel,
            out_shape=jax.ShapeDtypeStruct((M, V), out_dtype),
            grid_spec=pltpu.PrefetchScalarGridSpec(
                num_scalar_prefetch=0,
                grid=(n_m, n_v),
                in_specs=[
                    pl.BlockSpec((tm_eff, H), lambda i, j: (i, 0)),  # x rows
                    pl.BlockSpec((H, H), lambda i, j: (0, 0)),       # W1^T
                    pl.BlockSpec((1, H), lambda i, j: (0, 0)),       # b1
                    pl.BlockSpec((1, H), lambda i, j: (0, 0)),       # gamma
                    pl.BlockSpec((1, H), lambda i, j: (0, 0)),       # beta
                    pl.BlockSpec((H, tv_eff), lambda i, j: (0, j)),  # Wdec^T
                    pl.BlockSpec((1, tv_eff), lambda i, j: (0, j)),  # dec bias
                ],
                out_specs=pl.BlockSpec((tm_eff, tv_eff), lambda i, j: (i, j)),
                scratch_shapes=[pltpu.VMEM((tm_eff, H), compute_dtype)],
            ),
            compiler_params=cparams,
            cost_estimate=cost,
        )(xc, w1c, b1f, gf, bef, wdc, bdf)

    # ---------------- two-pass: stream the decoder weight exactly once -----
    # Pass 1: fused dense + GELU + LayerNorm; h written to HBM (compute dtype).
    cost1 = pl.CostEstimate(
        flops=2 * M * H * H, transcendentals=M * H,
        bytes_accessed=M * H * csz + H * H * csz + M * H * csz)
    h2d = pl.pallas_call(
        _transform_kernel,
        out_shape=jax.ShapeDtypeStruct((M, H), compute_dtype),
        grid_spec=pltpu.PrefetchScalarGridSpec(
            num_scalar_prefetch=0,
            grid=(n_m,),
            in_specs=[
                pl.BlockSpec((tm_eff, H), lambda i: (i, 0)),
                pl.BlockSpec((H, H), lambda i: (0, 0)),
                pl.BlockSpec((1, H), lambda i: (0, 0)),
                pl.BlockSpec((1, H), lambda i: (0, 0)),
                pl.BlockSpec((1, H), lambda i: (0, 0)),
            ],
            out_specs=pl.BlockSpec((tm_eff, H), lambda i: (i, 0)),
        ),
        compiler_params=pltpu.CompilerParams(
            dimension_semantics=("parallel",),
            vmem_limit_bytes=vmem_limit_bytes),
        cost_estimate=cost1,
    )(xc, w1c, b1f, gf, bef)

    # Pass 2: decoder matmul. Grid = (vocab OUTER, rows inner) so the Wdec
    # tile index depends only on the outer axis -> fetched once per vocab
    # tile, while the small h tiles are re-streamed V/tv times.
    cost2 = pl.CostEstimate(
        flops=2 * M * H * V, transcendentals=0,
        bytes_accessed=H * V * csz + n_v * M * H * csz + M * V * osz)
    return pl.pallas_call(
        _decoder_kernel,
        out_shape=jax.ShapeDtypeStruct((M, V), out_dtype),
        grid_spec=pltpu.PrefetchScalarGridSpec(
            num_scalar_prefetch=0,
            grid=(n_v, n_m),
            in_specs=[
                pl.BlockSpec((tm_eff, H), lambda j, i: (i, 0)),      # h rows
                pl.BlockSpec((H, tv_eff), lambda j, i: (0, j)),      # Wdec^T
                pl.BlockSpec((1, tv_eff), lambda j, i: (0, j)),      # dec bias
            ],
            out_specs=pl.BlockSpec((tm_eff, tv_eff), lambda j, i: (i, j)),
        ),
        compiler_params=cparams,
        cost_estimate=cost2,
    )(h2d, wdc, bdf)


def bert_only_mlm_head(x, params, *, compute_dtype=jnp.bfloat16,
                       out_dtype=jnp.float32, tm=None, tv=None,
                       vmem_limit_bytes=None, force_two_pass=False):
    """x: (B, S, H) -> (B, S, V) logits (out_dtype; bf16 logits also supported).

    Default compute path is bf16 matmul operands with f32 accumulation /
    bias / LayerNorm; pass compute_dtype=jnp.float32 for the exact debug path.
    """
    B, S, H = x.shape
    V = params["wdec_t"].shape[1]
    d_tm, d_tv, d_vmem = _chip_defaults()
    tm = d_tm if tm is None else tm
    tv = d_tv if tv is None else tv
    vmem_limit_bytes = d_vmem if vmem_limit_bytes is None else vmem_limit_bytes
    if np.dtype(compute_dtype).itemsize >= 4:
        # f32 debug path doubles the weight tiles; halve the vocab tile so the
        # working set stays within the (v7x-sized) scoped-VMEM budget.
        tv = max(512, (tv // 2 // 128) * 128)

    M = B * S
    # Fused path re-streams Wdec M/tm times; switch to the two-pass variant
    # (Wdec streamed exactly once) when that dominates HBM traffic.
    two_pass = force_two_pass or (M > 4 * tm)

    out2d = _mlm_head_2d(
        x.reshape(M, H), params["w1_t"], params["b1"], params["gamma"],
        params["beta"], params["wdec_t"], params["bdec"],
        tm=tm, tv=tv, vmem_limit_bytes=vmem_limit_bytes,
        compute_dtype=np.dtype(compute_dtype), out_dtype=np.dtype(out_dtype),
        two_pass=two_pass)
    return out2d.reshape(B, S, V)


def init_params(key, hidden_size, vocab_size):
    k1, k2, k3, k4 = jax.random.split(key, 4)
    w1 = jax.random.normal(k1, (hidden_size, hidden_size), jnp.float32) * 0.02
    b1 = jax.random.normal(k2, (hidden_size,), jnp.float32) * 0.02
    gamma = jnp.ones((hidden_size,), jnp.float32)
    beta = jnp.zeros((hidden_size,), jnp.float32)
    wdec = jax.random.normal(k3, (vocab_size, hidden_size), jnp.float32) * 0.02
    bdec = jax.random.normal(k4, (vocab_size,), jnp.float32) * 0.02
    return {
        "w1_t": w1.T,                          # (H, H) = dense.weight.T
        "b1": b1.reshape(1, hidden_size),      # (1, H)
        "gamma": gamma.reshape(1, hidden_size),
        "beta": beta.reshape(1, hidden_size),
        "wdec_t": wdec.T,                      # (H, V) = decoder.weight.T
        "bdec": bdec.reshape(1, vocab_size),   # (1, V) shared bias
    }


def _reference(x, params):
    hp = jax.lax.Precision.HIGHEST
    h = jnp.dot(x, params["w1_t"], precision=hp) + params["b1"][0]
    h = 0.5 * h * (1.0 + jax.lax.erf(h * INV_SQRT2))
    mu = jnp.mean(h, axis=-1, keepdims=True)
    var = jnp.mean((h - mu) ** 2, axis=-1, keepdims=True)
    h = (h - mu) * jax.lax.rsqrt(var + LN_EPS)
    h = h * params["gamma"][0] + params["beta"][0]
    return jnp.dot(h, params["wdec_t"], precision=hp) + params["bdec"][0]


if __name__ == "__main__":
    B, S, H, V = 2, 8, 32, 256
    key = jax.random.PRNGKey(0)
    kx, kp = jax.random.split(key)
    x = jax.random.normal(kx, (B, S, H), jnp.float32)
    params = init_params(kp, H, V)
    ref = _reference(x, params)

    # Default bf16 compute path (fused single-pass at this size).
    out = jax.block_until_ready(bert_only_mlm_head(x, params))
    assert out.shape == (B, S, V)
    assert jnp.allclose(out, ref, atol=2e-2, rtol=2e-2), "bf16 fused mismatch"

    # f32 debug path (matches the PyTorch module up to MXU summation order).
    out_f32 = jax.block_until_ready(
        bert_only_mlm_head(x, params, compute_dtype=jnp.float32))
    assert jnp.allclose(out_f32, ref, atol=5e-3, rtol=5e-3), "f32 mismatch"

    # Two-pass variant (decoder weight streamed exactly once), forced here.
    out_2p = jax.block_until_ready(
        bert_only_mlm_head(x, params, force_two_pass=True))
    assert jnp.allclose(out_2p, ref, atol=2e-2, rtol=2e-2), "two-pass mismatch"

    print("KERNEL_OK")
</pallas_src>

<mosaic_0001>
module attributes {stable_mosaic.version = 11 : i64} {
  func.func @_fused_kernel(%arg0: i32, %arg1: i32, %arg2: memref<16x32xbf16, #tpu.memory_space<vmem>>, %arg3: memref<32x32xbf16, #tpu.memory_space<vmem>>, %arg4: memref<1x32xf32, #tpu.memory_space<vmem>>, %arg5: memref<1x32xf32, #tpu.memory_space<vmem>>, %arg6: memref<1x32xf32, #tpu.memory_space<vmem>>, %arg7: memref<32x256xbf16, #tpu.memory_space<vmem>>, %arg8: memref<1x256xf32, #tpu.memory_space<vmem>>, %arg9: memref<16x256xf32, #tpu.memory_space<vmem>>, %arg10: memref<16x32xbf16, #tpu.memory_space<vmem>>) attributes {dimension_semantics = [#tpu.dimension_semantics<parallel>, #tpu.dimension_semantics<arbitrary>], iteration_bounds = array<i64: 1, 1>, scalar_prefetch = 0 : i64, scratch_operands = 1 : i64, tpu.core_type = #tpu.core_type<tc>, window_params = [{transform_indices = @transform_0, window_bounds = array<i64: 16, 32>}, {pipeline_mode = #tpu.pipeline_mode<synchronous>, transform_indices = @transform_1, window_bounds = array<i64: 32, 32>}, {pipeline_mode = #tpu.pipeline_mode<synchronous>, transform_indices = @transform_2, window_bounds = array<i64: 1, 32>}, {pipeline_mode = #tpu.pipeline_mode<synchronous>, transform_indices = @transform_3, window_bounds = array<i64: 1, 32>}, {pipeline_mode = #tpu.pipeline_mode<synchronous>, transform_indices = @transform_4, window_bounds = array<i64: 1, 32>}, {transform_indices = @transform_5, window_bounds = array<i64: 32, 256>}, {transform_indices = @transform_6, window_bounds = array<i64: 1, 256>}, {transform_indices = @transform_7, window_bounds = array<i64: 16, 256>}]} {
    %c0_i32 = arith.constant 0 : i32
    %0 = arith.cmpi eq, %arg1, %c0_i32 : i32
    %1 = arith.extui %0 : i1 to i32
    %c0_i32_0 = arith.constant 0 : i32
    %2 = arith.cmpi ne, %1, %c0_i32_0 : i32
    scf.if %2 {
      %c0_8 = arith.constant 0 : index
      %c0_9 = arith.constant 0 : index
      %10 = vector.load %arg2[%c0_8, %c0_9] : memref<16x32xbf16, #tpu.memory_space<vmem>>, vector<16x32xbf16>
      %c0_10 = arith.constant 0 : index
      %c0_11 = arith.constant 0 : index
      %11 = vector.load %arg3[%c0_10, %c0_11] : memref<32x32xbf16, #tpu.memory_space<vmem>>, vector<32x32xbf16>
      %c0_12 = arith.constant 0 : index
      %c0_13 = arith.constant 0 : index
      %12 = vector.load %arg4[%c0_12, %c0_13] : memref<1x32xf32, #tpu.memory_space<vmem>>, vector<1x32xf32>
      %c0_14 = arith.constant 0 : index
      %c0_15 = arith.constant 0 : index
      %13 = vector.load %arg5[%c0_14, %c0_15] : memref<1x32xf32, #tpu.memory_space<vmem>>, vector<1x32xf32>
      %c0_16 = arith.constant 0 : index
      %c0_17 = arith.constant 0 : index
      %14 = vector.load %arg6[%c0_16, %c0_17] : memref<1x32xf32, #tpu.memory_space<vmem>>, vector<1x32xf32>
      %cst_18 = arith.constant dense<0.000000e+00> : vector<16x32xf32>
      %15 = tpu.matmul %10, %11, %cst_18 {dimension_numbers = #tpu.dot_dimension_numbers<[1], [0], [0], [1], [0, 0, 1, 1], [], []>} : vector<16x32xbf16>, vector<32x32xbf16>, vector<16x32xf32> -> vector<16x32xf32>
      %16 = vector.broadcast %12 : vector<1x32xf32> to vector<16x32xf32>
      %17 = arith.addf %15, %16 : vector<16x32xf32>
      %cst_19 = arith.constant 5.000000e-01 : f32
      %18 = vector.broadcast %cst_19 : f32 to vector<16x32xf32>
      %19 = arith.mulf %18, %17 : vector<16x32xf32>
      %cst_20 = arith.constant 0.707106769 : f32
      %20 = vector.broadcast %cst_20 : f32 to vector<16x32xf32>
      %21 = arith.mulf %17, %20 : vector<16x32xf32>
      %22 = math.erf %21 : vector<16x32xf32>
      %cst_21 = arith.constant 1.000000e+00 : f32
      %23 = vector.broadcast %cst_21 : f32 to vector<16x32xf32>
      %24 = arith.addf %23, %22 : vector<16x32xf32>
      %25 = arith.mulf %19, %24 : vector<16x32xf32>
      %cst_22 = arith.constant dense<0.000000e+00> : vector<16xf32>
      %26 = vector.multi_reduction <add>, %25, %cst_22 [1] : vector<16x32xf32> to vector<16xf32>
      %27 = vector.shape_cast %26 : vector<16xf32> to vector<16x1xf32>
      %cst_23 = arith.constant 3.200000e+01 : f32
      %28 = vector.broadcast %cst_23 : f32 to vector<16x1xf32>
      %29 = arith.divf %27, %28 : vector<16x1xf32>
      %30 = vector.broadcast %29 : vector<16x1xf32> to vector<16x32xf32>
      %31 = arith.subf %25, %30 : vector<16x32xf32>
      %32 = vector.broadcast %29 : vector<16x1xf32> to vector<16x32xf32>
      %33 = arith.subf %25, %32 : vector<16x32xf32>
      %34 = arith.mulf %31, %33 : vector<16x32xf32>
      %cst_24 = arith.constant dense<0.000000e+00> : vector<16xf32>
      %35 = vector.multi_reduction <add>, %34, %cst_24 [1] : vector<16x32xf32> to vector<16xf32>
      %36 = vector.shape_cast %35 : vector<16xf32> to vector<16x1xf32>
      %cst_25 = arith.constant 3.200000e+01 : f32
      %37 = vector.broadcast %cst_25 : f32 to vector<16x1xf32>
      %38 = arith.divf %36, %37 : vector<16x1xf32>
      %39 = vector.broadcast %29 : vector<16x1xf32> to vector<16x32xf32>
      %40 = arith.subf %25, %39 : vector<16x32xf32>
      %cst_26 = arith.constant 9.99999974E-6 : f32
      %41 = vector.broadcast %cst_26 : f32 to vector<16x1xf32>
      %42 = arith.addf %38, %41 : vector<16x1xf32>
      %43 = math.rsqrt %42 : vector<16x1xf32>
      %44 = vector.broadcast %43 : vector<16x1xf32> to vector<16x32xf32>
      %45 = arith.mulf %40, %44 : vector<16x32xf32>
      %46 = vector.broadcast %13 : vector<1x32xf32> to vector<16x32xf32>
      %47 = arith.mulf %45, %46 : vector<16x32xf32>
      %48 = vector.broadcast %14 : vector<1x32xf32> to vector<16x32xf32>
      %49 = arith.addf %47, %48 : vector<16x32xf32>
      %50 = arith.truncf %49 : vector<16x32xf32> to vector<16x32xbf16>
      %c0_27 = arith.constant 0 : index
      %c0_28 = arith.constant 0 : index
      %51 = vector.load %arg10[%c0_27, %c0_28] : memref<16x32xbf16, #tpu.memory_space<vmem>>, vector<16x32xbf16>
      tpu.vector_store %arg10[%c0_27, %c0_28], %50 {strides = array<i32>} : memref<16x32xbf16, #tpu.memory_space<vmem>>, vector<16x32xbf16>,
    } else {
    }
    %c0 = arith.constant 0 : index
    %c0_1 = arith.constant 0 : index
    %3 = vector.load %arg10[%c0, %c0_1] : memref<16x32xbf16, #tpu.memory_space<vmem>>, vector<16x32xbf16>
    %c0_2 = arith.constant 0 : index
    %c0_3 = arith.constant 0 : index
    %4 = vector.load %arg7[%c0_2, %c0_3] : memref<32x256xbf16, #tpu.memory_space<vmem>>, vector<32x256xbf16>
    %cst = arith.constant dense<0.000000e+00> : vector<16x256xf32>
    %5 = tpu.matmul %3, %4, %cst {dimension_numbers = #tpu.dot_dimension_numbers<[1], [0], [0], [1], [0, 0, 1, 1], [], []>} : vector<16x32xbf16>, vector<32x256xbf16>, vector<16x256xf32> -> vector<16x256xf32>
    %c0_4 = arith.constant 0 : index
    %c0_5 = arith.constant 0 : index
    %6 = vector.load %arg8[%c0_4, %c0_5] : memref<1x256xf32, #tpu.memory_space<vmem>>, vector<1x256xf32>
    %7 = vector.broadcast %6 : vector<1x256xf32> to vector<16x256xf32>
    %8 = arith.addf %5, %7 : vector<16x256xf32>
    %c0_6 = arith.constant 0 : index
    %c0_7 = arith.constant 0 : index
    %9 = vector.load %arg9[%c0_6, %c0_7] : memref<16x256xf32, #tpu.memory_space<vmem>>, vector<16x256xf32>
    tpu.vector_store %arg9[%c0_6, %c0_7], %8 {strides = array<i32>} : memref<16x256xf32, #tpu.memory_space<vmem>>, vector<16x256xf32>,
    return
  }
  func.func @transform_0(%arg0: i32, %arg1: i32) -> (i32, i32) {
    %c0_i32 = arith.constant 0 : i32
    %c0_i32_0 = arith.constant 0 : i32
    return %arg0, %c0_i32 : i32, i32
  }
  func.func @transform_1(%arg0: i32, %arg1: i32) -> (i32, i32) {
    %c0_i32 = arith.constant 0 : i32
    %c0_i32_0 = arith.constant 0 : i32
    %c0_i32_1 = arith.constant 0 : i32
    return %c0_i32, %c0_i32_0 : i32, i32
  }
  func.func @transform_2(%arg0: i32, %arg1: i32) -> (i32, i32) {
    %c0_i32 = arith.constant 0 : i32
    %c0_i32_0 = arith.constant 0 : i32
    %c0_i32_1 = arith.constant 0 : i32
    return %c0_i32, %c0_i32_0 : i32, i32
  }
  func.func @transform_3(%arg0: i32, %arg1: i32) -> (i32, i32) {
    %c0_i32 = arith.constant 0 : i32
    %c0_i32_0 = arith.constant 0 : i32
    %c0_i32_1 = arith.constant 0 : i32
    return %c0_i32, %c0_i32_0 : i32, i32
  }
  func.func @transform_4(%arg0: i32, %arg1: i32) -> (i32, i32) {
    %c0_i32 = arith.constant 0 : i32
    %c0_i32_0 = arith.constant 0 : i32
    %c0_i32_1 = arith.constant 0 : i32
    return %c0_i32, %c0_i32_0 : i32, i32
  }
  func.func @transform_5(%arg0: i32, %arg1: i32) -> (i32, i32) {
    %c0_i32 = arith.constant 0 : i32
    %c0_i32_0 = arith.constant 0 : i32
    return %c0_i32, %arg1 : i32, i32
  }
  func.func @transform_6(%arg0: i32, %arg1: i32) -> (i32, i32) {
    %c0_i32 = arith.constant 0 : i32
    %c0_i32_0 = arith.constant 0 : i32
    return %c0_i32, %arg1 : i32, i32
  }
  func.func @transform_7(%arg0: i32, %arg1: i32) -> (i32, i32) {
    %c0_i32 = arith.constant 0 : i32
    return %arg0, %arg1 : i32, i32
  }
}

</mosaic_0001>

<llo_original>
// kernel: _mlm_head_2d.1
$region0: #{_mlm_head_2d.1}
  #allocation0 [shape = 'u32[]', space=smem, size = 0x4, offset = 0x4, fixed_abs, tag = 'smem constant byte address 0x4 - core index']
  #allocation1 [shape = 'u32[144,128]{1,0:T(1,128)}', space=vmem, size = 0x12000, scoped, tag = 'internal scratch']
  #allocation2 [shape = 'bf16[16,32]{1,0:T(16,128)(2,1)}', space=vmem, size = 0x1000, scoped, tag = 'scratch operand']
  %s0 = inlined_call_operand.hbm [shape: bf16[16,32], index: 0, kind: input, shape index: {}]
  %s1 = inlined_call_operand.hbm [shape: bf16[32,32], index: 1, kind: input, shape index: {}]
  %s2 = inlined_call_operand.hbm [shape: f32[1,32], index: 2, kind: input, shape index: {}]
  %s3 = inlined_call_operand.hbm [shape: f32[1,32], index: 3, kind: input, shape index: {}]
  %s4 = inlined_call_operand.hbm [shape: f32[1,32], index: 4, kind: input, shape index: {}]
  %s5 = inlined_call_operand.hbm [shape: bf16[32,256], index: 5, kind: input, shape index: {}]
  %s6 = inlined_call_operand.hbm [shape: f32[1,256], index: 6, kind: input, shape index: {}]
  %s7 = inlined_call_operand.hbm [shape: f32[16,256], index: 7, kind: output, shape index: {}]
  %s8 = sld [smem:[#allocation0]]
  $region70: #{_mlm_head_2d.1} parent=0
    _
  %s10 = ssub.s32 1, %s8
  %s11 = scalar_select 0, %s10, %s8
  $region1: #{_mlm_head_2d.1} parent=0
    #allocation3 [shape = 'u8[4096]{0}', space=vmem, size = 0x1000, scoped, tag = 'input window, operand 0, single buffered']
    #allocation4 [shape = 's32[1]{0}', space=sflag, size = 0x4, scoped, tag = 'scoped memory for _mlm_head_2d.1']
    #allocation5 [shape = 's32[1]{0}', space=sflag, size = 0x4, scoped, tag = 'scoped memory for _mlm_head_2d.1']
    #allocation6 [shape = 'u8[8192]{0}', space=vmem, size = 0x2000, scoped, tag = 'input window, operand 1, single buffered']
    #allocation7 [shape = 's32[1]{0}', space=sflag, size = 0x4, scoped, tag = 'scoped memory for _mlm_head_2d.1']
    #allocation8 [shape = 'u8[512]{0}', space=vmem, size = 0x400, scoped, tag = 'input window, operand 2, single buffered']
    #allocation9 [shape = 'u8[512]{0}', space=vmem, size = 0x400, scoped, tag = 'input window, operand 3, single buffered']
    #allocation10 [shape = 's32[1]{0}', space=sflag, size = 0x4, scoped, tag = 'scoped memory for _mlm_head_2d.1']
    #allocation11 [shape = 'u8[512]{0}', space=vmem, size = 0x400, scoped, tag = 'input window, operand 4, single buffered']
    #allocation12 [shape = 'u8[16384]{0}', space=vmem, size = 0x4000, scoped, tag = 'input window, operand 5, single buffered']
    #allocation13 [shape = 's32[1]{0}', space=sflag, size = 0x4, scoped, tag = 'scoped memory for _mlm_head_2d.1']
    #allocation14 [shape = 'u8[1024]{0}', space=vmem, size = 0x400, scoped, tag = 'input window, operand 6, single buffered']
    #allocation15 [shape = 'u8[16384]{0}', space=vmem, size = 0x4000, scoped, tag = 'output window, operand 0, single buffered']
    %12 = vsyncpa [#allocation4], 0
    %13 = vsyncpa [#allocation7], 0
    %14 = vsyncpa [#allocation10], 0
    %15 = vsyncpa [#allocation13], 0
    %16 = vsyncpa [#allocation5], 0
    // Predicated region
    $region2: #{_mlm_head_2d.1} parent=1 // pred_check
      _
    $region3: #{_mlm_head_2d.1} parent=1 // pred_check_branch
      %18 = sbr.rel (0) target = $region5
    $region4: #{_mlm_head_2d.1} parent=1 // pred_region
      %s20 = ssub.s32 128, 128
      %21 = vsyncadd [#allocation4], %s20
      %s22 = sshll.u32 [#allocation3], 4
      %s23 = int_to_ptr.vmem [resolvable:$true] %s22
      %28 = dma.hbm_to_vmem [thread:$0]  %s0, 128, %s23, [#allocation4], 64, 64, 4
    $region5: #{_mlm_head_2d.1} parent=1 // pred_fallthru
      _
    // Predicated region
    $region6: #{_mlm_head_2d.1} parent=1 // pred_check
      _
    $region7: #{_mlm_head_2d.1} parent=1 // pred_check_branch
      %30 = sbr.rel (0) target = $region9
    $region8: #{_mlm_head_2d.1} parent=1 // pred_region
      %s32 = ssub.s32 256, 256
      %33 = vsyncadd [#allocation7], %s32
      %s34 = sshll.u32 [#allocation6], 4
      %s35 = int_to_ptr.vmem [resolvable:$true] %s34
      %40 = dma.hbm_to_vmem [thread:$0]  %s1, 256, %s35, [#allocation7], 64, 64, 4
    $region9: #{_mlm_head_2d.1} parent=1 // pred_fallthru
      _
    // Predicated region
    $region10: #{_mlm_head_2d.1} parent=1 // pred_check
      _
    $region11: #{_mlm_head_2d.1} parent=1 // pred_check_branch
      %42 = sbr.rel (0) target = $region13
    $region12: #{_mlm_head_2d.1} parent=1 // pred_region
      %s44 = ssub.s32 16, 16
      %45 = vsyncadd [#allocation7], %s44
      %s47 = sshll.u32 [#allocation8], 4
      %s48 = int_to_ptr.vmem [resolvable:$true] %s47
      %50 = dma.hbm_to_vmem [thread:$0]  %s2, 16, %s48, [#allocation7]
    $region13: #{_mlm_head_2d.1} parent=1 // pred_fallthru
      _
    // Predicated region
    $region14: #{_mlm_head_2d.1} parent=1 // pred_check
      _
    $region15: #{_mlm_head_2d.1} parent=1 // pred_check_branch
      %52 = sbr.rel (0) target = $region17
    $region16: #{_mlm_head_2d.1} parent=1 // pred_region
      %s54 = ssub.s32 16, 16
      %55 = vsyncadd [#allocation10], %s54
      %s57 = sshll.u32 [#allocation9], 4
      %s58 = int_to_ptr.vmem [resolvable:$true] %s57
      %60 = dma.hbm_to_vmem [thread:$0]  %s3, 16, %s58, [#allocation10]
    $region17: #{_mlm_head_2d.1} parent=1 // pred_fallthru
      _
    // Predicated region
    $region18: #{_mlm_head_2d.1} parent=1 // pred_check
      _
    $region19: #{_mlm_head_2d.1} parent=1 // pred_check_branch
      %62 = sbr.rel (0) target = $region21
    $region20: #{_mlm_head_2d.1} parent=1 // pred_region
      %s64 = ssub.s32 16, 16
      %65 = vsyncadd [#allocation10], %s64
      %s67 = sshll.u32 [#allocation11], 4
      %s68 = int_to_ptr.vmem [resolvable:$true] %s67
      %70 = dma.hbm_to_vmem [thread:$0]  %s4, 16, %s68, [#allocation10]
    $region21: #{_mlm_head_2d.1} parent=1 // pred_fallthru
      _
    // Predicated region
    $region22: #{_mlm_head_2d.1} parent=1 // pred_check
      _
    $region23: #{_mlm_head_2d.1} parent=1 // pred_check_branch
      %72 = sbr.rel (0) target = $region25
    $region24: #{_mlm_head_2d.1} parent=1 // pred_region
      %s74 = ssub.s32 512, 512
      %75 = vsyncadd [#allocation13], %s74
      %s76 = sshll.u32 [#allocation12], 4
      %s77 = int_to_ptr.vmem [resolvable:$true] %s76
      %82 = dma.hbm_to_vmem [thread:$0]  %s5, 512, %s77, [#allocation13], 128, 128, 8
    $region25: #{_mlm_head_2d.1} parent=1 // pred_fallthru
      _
    // Predicated region
    $region26: #{_mlm_head_2d.1} parent=1 // pred_check
      _
    $region27: #{_mlm_head_2d.1} parent=1 // pred_check_branch
      %84 = sbr.rel (0) target = $region29
    $region28: #{_mlm_head_2d.1} parent=1 // pred_region
      %s86 = ssub.s32 32, 32
      %87 = vsyncadd [#allocation13], %s86
      %s89 = sshll.u32 [#allocation14], 4
      %s90 = int_to_ptr.vmem [resolvable:$true] %s89
      %92 = dma.hbm_to_vmem [thread:$0]  %s6, 32, %s90, [#allocation13]
    $region29: #{_mlm_head_2d.1} parent=1 // pred_fallthru
      _
    // Predicated region
    $region30: #{_mlm_head_2d.1} parent=1 // pred_check
      _
    $region31: #{_mlm_head_2d.1} parent=1 // pred_check_branch
      %94 = sbr.rel (0) target = $region33
    $region32: #{_mlm_head_2d.1} parent=1 // pred_region
      %95 = dma.done [#allocation4], 128
    $region33: #{_mlm_head_2d.1} parent=1 // pred_fallthru
      _
    // Predicated region
    $region34: #{_mlm_head_2d.1} parent=1 // pred_check
      _
    $region35: #{_mlm_head_2d.1} parent=1 // pred_check_branch
      %97 = sbr.rel (0) target = $region37
    $region36: #{_mlm_head_2d.1} parent=1 // pred_region
      %98 = dma.done [#allocation7], 256
    $region37: #{_mlm_head_2d.1} parent=1 // pred_fallthru
      _
    // Predicated region
    $region38: #{_mlm_head_2d.1} parent=1 // pred_check
      _
    $region39: #{_mlm_head_2d.1} parent=1 // pred_check_branch
      %100 = sbr.rel (0) target = $region41
    $region40: #{_mlm_head_2d.1} parent=1 // pred_region
      %101 = dma.done [#allocation7], 16
    $region41: #{_mlm_head_2d.1} parent=1 // pred_fallthru
      _
    // Predicated region
    $region42: #{_mlm_head_2d.1} parent=1 // pred_check
      _
    $region43: #{_mlm_head_2d.1} parent=1 // pred_check_branch
      %103 = sbr.rel (0) target = $region45
    $region44: #{_mlm_head_2d.1} parent=1 // pred_region
      %104 = dma.done [#allocation10], 16
    $region45: #{_mlm_head_2d.1} parent=1 // pred_fallthru
      _
    // Predicated region
    $region46: #{_mlm_head_2d.1} parent=1 // pred_check
      _
    $region47: #{_mlm_head_2d.1} parent=1 // pred_check_branch
      %106 = sbr.rel (0) target = $region49
    $region48: #{_mlm_head_2d.1} parent=1 // pred_region
      %107 = dma.done [#allocation10], 16
    $region49: #{_mlm_head_2d.1} parent=1 // pred_fallthru
      _
    // Predicated region
    $region50: #{_mlm_head_2d.1} parent=1 // pred_check
      _
    $region51: #{_mlm_head_2d.1} parent=1 // pred_check_branch
      %109 = sbr.rel (0) target = $region53
    $region52: #{_mlm_head_2d.1} parent=1 // pred_region
      %110 = dma.done [#allocation13], 512
    $region53: #{_mlm_head_2d.1} parent=1 // pred_fallthru
      _
    // Predicated region
    $region54: #{_mlm_head_2d.1} parent=1 // pred_check
      _
    $region55: #{_mlm_head_2d.1} parent=1 // pred_check_branch
      %112 = sbr.rel (0) target = $region57
    $region56: #{_mlm_head_2d.1} parent=1 // pred_region
      %113 = dma.done [#allocation13], 32
    $region57: #{_mlm_head_2d.1} parent=1 // pred_fallthru
      _
    %p115 = scmp.eq.s32.totalorder 0, 0
    // Predicated region
    $region58: #{_mlm_head_2d.1} parent=1 // pred_check
      %p116 = pneg %p115
    $region59: #{_mlm_head_2d.1} parent=1 // pred_check_branch
      %118 = sbr.rel (%p116) target = $region61
    $region60: #{_mlm_head_2d.1} parent=1 // pred_region
      %v119 = vld [vmem:[#allocation3] sm:$0xf]
      %v120 = vld [vmem:[#allocation3 + $0x4] sm:$0xf]
      %v121 = vld [vmem:[#allocation6] sm:$0xf]
      %v122 = vld [vmem:[#allocation6 + $0x4] sm:$0xf]
      %v123 = vld [vmem:[#allocation6 + $0x8] sm:$0xf]
      %v124 = vld [vmem:[#allocation6 + $0xc] sm:$0xf]
      %v125 = vld [vmem:[#allocation8] sm:$0x1]
      %v126 = vld [vmem:[#allocation9] sm:$0x1]
      %v127 = vld [vmem:[#allocation11] sm:$0x1]
      %v129 = vlaneseq
      %v130 = vshrl.u32 %v129, 7
      %v131 = vsub.s32 0, %v130
      %v132 = vrot.slane %v125, %v131
      %v136 = vunpack.c.l.b16 %v119
      %v137 = vunpack.c.l.b16 %v120
      %v138 = vpack.c.b16 %v137, %v136
      %v143 = vunpack.c.l.b16 %v121
      %v144 = vunpack.c.l.b16 %v122
      %v145 = vunpack.c.l.b16 %v123
      %v146 = vunpack.c.l.b16 %v124
      %v147 = vpack.c.b16 %v144, %v143
      %v148 = vpack.c.b16 %v146, %v145
      %vm151 = vcmask 261120
      %v153 = vsel %vm151, %v138, 0
      %155 = vmatprep.subr.bf16.mxu0 0
      %156 = vmatpush1.bf16.msra.mxu0 %v147
      %157 = vmatprep.subr.bf16.mxu0 0
      %158 = vmatpush1.bf16.msra.mxu0 %v148
      %159 = vmatprep.subr.bf16.mxu0 0
      %160 = vmatpush1.bf16.msra.mxu0 0
      %161 = vmatprep.subr.bf16.mxu0 0
      %162 = vmatpush1.bf16.msra.mxu0 0
      %163 = vmatprep.subr.bf16.mxu0 0
      %164 = vmatpush1.bf16.msra.mxu0 0
      %165 = vmatprep.subr.bf16.mxu0 0
      %166 = vmatpush1.bf16.msra.mxu0 0
      %167 = vmatprep.subr.bf16.mxu0 0
      %168 = vmatpush1.bf16.msra.mxu0 0
      %169 = vmatprep.subr.bf16.mxu0 0
      %170 = vmatpush1.bf16.msra.mxu0 0
      %171 = vmatprep.subr.bf16.mxu0 0
      %172 = vmatpush1.bf16.msra.mxu0 0
      %173 = vmatprep.subr.bf16.mxu0 0
      %174 = vmatpush1.bf16.msra.mxu0 0
      %175 = vmatprep.subr.bf16.mxu0 0
      %176 = vmatpush1.bf16.msra.mxu0 0
      %177 = vmatprep.subr.bf16.mxu0 0
      %178 = vmatpush1.bf16.msra.mxu0 0
      %179 = vmatprep.subr.bf16.mxu0 0
      %180 = vmatpush1.bf16.msra.mxu0 0
      %181 = vmatprep.subr.bf16.mxu0 0
      %182 = vmatpush1.bf16.msra.mxu0 0
      %183 = vmatprep.subr.bf16.mxu0 0
      %184 = vmatpush1.bf16.msra.mxu0 0
      %185 = vmatprep.subr.bf16.mxu0 0
      %186 = vmatpush1.bf16.msra.mxu0 0
      %187 = vmatprep.mubr.bf16.mxu0 0
      %188 = vmatmul.mubr.bf16.gmra.mrb[0].mxu0 %v153
      %v189 = vpop.f32.mrb[0].mxu0
      %v190 = vadd.f32 %v132, %v189
      %v191 = vpop.f32.mrb[0].mxu0
      %v192 = vpop.f32.mrb[0].mxu0
      %v193 = vadd.f32 %v132, %v192
      %v194 = vpop.f32.mrb[0].mxu0
      %195 = vdwg.mxu0
      %v196 = vmul.f32 %v190, 0.5
      %v197 = vmul.f32 %v193, 0.5
      %v198 = vmul.f32 %v190, 0.70710677
      %v199 = vmul.f32 %v193, 0.70710677
      %v200 = verf.f32.pop %v198
      %v201 = verf.f32.pop %v199
      %v202 = vadd.f32 %v200, 1.0
      %v203 = vadd.f32 %v201, 1.0
      %v204 = vmul.f32 %v196, %v202
      %v205 = vmul.f32 %v197, %v203
      %v206 = vsel %vm151, %v204, 0.0
      %207 = vadd.xlane.f32.xlu0 %v206
      %v208 = vpop.xlane.xlu0 %207
      %v209 = vsel %vm151, %v205, 0.0
      %210 = vadd.xlane.f32.xlu0 %v209
      %v211 = vpop.xlane.xlu0 %210
      %v212 = vrcp.pop 32.0
      %v213 = vmul.f32 %v208, %v212
      %v214 = vmul.f32 %v211, %v212
      %v215 = vsub.f32 %v204, %v213
      %v216 = vsub.f32 %v205, %v214
      %v217 = vmul.f32 %v215, %v215
      %v218 = vmul.f32 %v216, %v216
      %v219 = vsel %vm151, %v217, 0.0
      %220 = vadd.xlane.f32.xlu0 %v219
      %v221 = vpop.xlane.xlu0 %220
      %v222 = vsel %vm151, %v218, 0.0
      %223 = vadd.xlane.f32.xlu0 %v222
      %v224 = vpop.xlane.xlu0 %223
      %v225 = vmul.f32 %v221, %v212
      %v226 = vmul.f32 %v224, %v212
      %v227 = vadd.f32 %v225, 1e-05
      %v228 = vadd.f32 %v226, 1e-05
      %v229 = vrsqrt.pop %v227
      %v230 = vrsqrt.pop %v228
      %v231 = vmul.f32 %v215, %v229
      %v232 = vmul.f32 %v216, %v230
      %v234 = vlaneseq
      %v235 = vshrl.u32 %v234, 7
      %v236 = vsub.s32 0, %v235
      %v237 = vrot.slane %v126, %v236
      %v239 = vmul.f32 %v231, %v237
      %v240 = vmul.f32 %v232, %v237
      %v242 = vlaneseq
      %v243 = vshrl.u32 %v242, 7
      %v244 = vsub.s32 0, %v243
      %v245 = vrot.slane %v127, %v244
      %v247 = vadd.f32 %v239, %v245
      %v248 = vadd.f32 %v240, %v245
      %v249 = vpack.c.bf16 %v248, %v247
      %250 = vst.msk [vmem:[#allocation2] sm:$0xff] %vm151, %v249
    $region61: #{_mlm_head_2d.1} parent=1 // pred_fallthru
      _
    %v251 = vld [vmem:[#allocation2] sm:$0xff]
    %v252 = vld [vmem:[#allocation12] sm:$0xff]
    %v253 = vld [vmem:[#allocation12 + $0x8] sm:$0xff]
    %v254 = vld [vmem:[#allocation12 + $0x10] sm:$0xff]
    %v255 = vld [vmem:[#allocation12 + $0x18] sm:$0xff]
    %v256 = vld [vmem:[#allocation14] sm:$0x3]
    %v258 = vlaneseq
    %v259 = vshrl.u32 %v258, 7
    %v260 = vsub.s32 0, %v259
    %v261 = vrot.slane %v256, %v260
    %v262 = vlaneseq
    %v263 = vshrl.u32 %v262, 7
    %v264 = vsub.s32 1, %v263
    %v265 = vrot.slane %v256, %v264
    %v272 = vunpack.c.l.b16 %v252
    %v273 = vunpack.c.h.b16 %v252
    %v274 = vunpack.c.l.b16 %v253
    %v275 = vunpack.c.h.b16 %v253
    %v276 = vunpack.c.l.b16 %v254
    %v277 = vunpack.c.h.b16 %v254
    %v278 = vunpack.c.l.b16 %v255
    %v279 = vunpack.c.h.b16 %v255
    %v280 = vpack.c.b16 %v274, %v272
    %v281 = vpack.c.b16 %v275, %v273
    %v282 = vpack.c.b16 %v278, %v276
    %v283 = vpack.c.b16 %v279, %v277
    %vm288 = vcmask 261120
    %v290 = vsel %vm288, %v251, 0
    %292 = vmatprep.subr.bf16.mxu0 %v281
    %293 = vmatpush1.bf16.msra.mxu0 %v280
    %294 = vmatprep.subr.bf16.mxu0 %v283
    %295 = vmatpush1.bf16.msra.mxu0 %v282
    %296 = vmatprep.subr.bf16.mxu0 0
    %297 = vmatpush1.bf16.msra.mxu0 0
    %298 = vmatprep.subr.bf16.mxu0 0
    %299 = vmatpush1.bf16.msra.mxu0 0
    %300 = vmatprep.subr.bf16.mxu0 0
    %301 = vmatpush1.bf16.msra.mxu0 0
    %302 = vmatprep.subr.bf16.mxu0 0
    %303 = vmatpush1.bf16.msra.mxu0 0
    %304 = vmatprep.subr.bf16.mxu0 0
    %305 = vmatpush1.bf16.msra.mxu0 0
    %306 = vmatprep.subr.bf16.mxu0 0
    %307 = vmatpush1.bf16.msra.mxu0 0
    %308 = vmatprep.subr.bf16.mxu0 0
    %309 = vmatpush1.bf16.msra.mxu0 0
    %310 = vmatprep.subr.bf16.mxu0 0
    %311 = vmatpush1.bf16.msra.mxu0 0
    %312 = vmatprep.subr.bf16.mxu0 0
    %313 = vmatpush1.bf16.msra.mxu0 0
    %314 = vmatprep.subr.bf16.mxu0 0
    %315 = vmatpush1.bf16.msra.mxu0 0
    %316 = vmatprep.subr.bf16.mxu0 0
    %317 = vmatpush1.bf16.msra.mxu0 0
    %318 = vmatprep.subr.bf16.mxu0 0
    %319 = vmatpush1.bf16.msra.mxu0 0
    %320 = vmatprep.subr.bf16.mxu0 0
    %321 = vmatpush1.bf16.msra.mxu0 0
    %322 = vmatprep.subr.bf16.mxu0 0
    %323 = vmatpush1.bf16.msra.mxu0 0
    %324 = vmatprep.mubr.bf16.mxu0 0
    %325 = vmatmul.mubr.bf16.gmra.mrb[0].mxu0 %v290
    %v326 = vpop.f32.mrb[0].mxu0
    %v327 = vadd.f32 %v261, %v326
    %v328 = vpop.f32.mrb[0].mxu0
    %v329 = vadd.f32 %v265, %v328
    %v330 = vpop.f32.mrb[0].mxu0
    %v331 = vadd.f32 %v261, %v330
    %v332 = vpop.f32.mrb[0].mxu0
    %v333 = vadd.f32 %v265, %v332
    %334 = vdwg.mxu0
    %335 = vst [vmem:[#allocation15] sm:$0xff] %v327
    %336 = vst [vmem:[#allocation15 + $0x8] sm:$0xff] %v329
    %337 = vst [vmem:[#allocation15 + $0x10] sm:$0xff] %v331
    %338 = vst [vmem:[#allocation15 + $0x18] sm:$0xff] %v333
    // Predicated region
    $region62: #{_mlm_head_2d.1} parent=1 // pred_check
      _
    $region63: #{_mlm_head_2d.1} parent=1 // pred_check_branch
      %340 = sbr.rel (0) target = $region65
    $region64: #{_mlm_head_2d.1} parent=1 // pred_region
      %s342 = ssub.s32 512, 512
      %343 = vsyncadd [#allocation5], %s342
      %s344 = sshll.u32 [#allocation15], 4
      %s345 = int_to_ptr.vmem [resolvable:$true] %s344
      %350 = dma.vmem_to_hbm [thread:$0]  %s345, 512, %s7, [#allocation5], 256, 256, 16
    $region65: #{_mlm_head_2d.1} parent=1 // pred_fallthru
      _
    // Predicated region
    $region66: #{_mlm_head_2d.1} parent=1 // pred_check
      _
    $region67: #{_mlm_head_2d.1} parent=1 // pred_check_branch
      %352 = sbr.rel (0) target = $region69
    $region68: #{_mlm_head_2d.1} parent=1 // pred_region
      %353 = dma.done [#allocation5], 512
    $region69: #{_mlm_head_2d.1} parent=1 // pred_fallthru
      _
    %354 = vsyncpa [#allocation4], 1
    %355 = vsyncpa [#allocation7], 1
    %356 = vsyncpa [#allocation10], 1
    %357 = vsyncpa [#allocation13], 1
    %358 = vsyncpa [#allocation5], 1

</llo_original>
